<compile_context>
chip_gen: v7x
topology: tpu7x:2x2x1
jax: 0.10.0
libtpu: 0.0.40
codegen_flags: <defaults>
</compile_context>

<pallas_src>
import functools

import jax
import jax.numpy as jnp
from jax.experimental import pallas as pl
from jax.experimental.pallas import tpu as pltpu


def _round_up(x: int, m: int) -> int:
    return (x + m - 1) // m * m


def _sublane(dtype) -> int:
    # Sublane multiple: 8 for 32-bit, 16 for bf16, 32 for 8-bit dtypes.
    return max(8, 32 // jnp.dtype(dtype).itemsize)


def _vmem_capacity_bytes() -> int:
    try:
        return int(pltpu.get_tpu_info().vmem_capacity_bytes)
    except Exception:
        return 64 * 1024 * 1024          # conservative default (v7x per-TC VMEM)


_VMEM_CAP = _vmem_capacity_bytes()
# Scoped limit well below physical (48 MiB on v7x, 96 MiB on v5e/v6e), and a
# slightly smaller budget for our own tiling plan (headroom for internal
# scratch / semaphores).
_VMEM_LIMIT = min(int(_VMEM_CAP * 0.75), 100 * 1024 * 1024)
_VMEM_BUDGET = int(_VMEM_LIMIT * 0.9)


def _conv1d_kernel(x_ref, w_ref, b_ref, o_ref):
    # x_ref: (tm, nx), w_ref: (nx, tn|nf), b_ref: (1, tn|nf) f32, o_ref: (tm, tn|nf)
    x = x_ref[...]
    if x.dtype != w_ref.dtype:
        # Per-tile VPU cast (e.g. f32 -> bf16 MXU input); hides under MXU work
        # and avoids an extra wrapper-side HBM pass over x.
        x = x.astype(w_ref.dtype)
    acc = jnp.dot(x, w_ref[...], preferred_element_type=jnp.float32)
    o_ref[...] = (acc + b_ref[...]).astype(o_ref.dtype)


@functools.partial(
    jax.jit, static_argnames=("tm", "tn", "compute_dtype", "weight_resident"))
def conv1d(x, w, b, *, tm=None, tn=None, compute_dtype=jnp.bfloat16,
           weight_resident=None):
    """x: [..., nx], w: [nx, nf], b: [nf] -> [..., nf]  (== torch.addmm path).

    compute_dtype: MXU input dtype (default bf16; accumulate/bias stay f32).
                   Pass jnp.float32 (or None) for the exact-f32 module path.
    weight_resident: None = auto (fit-in-VMEM heuristic), or force True/False.
    """
    nx, nf = w.shape
    lead = x.shape[:-1]
    out_dtype = x.dtype
    out_isz = jnp.dtype(out_dtype).itemsize

    x2d = x.reshape(-1, nx)                      # (M, nx) == x.view(-1, nx)
    M = x2d.shape[0]

    # Weight/bias prep: one cheap pass over the (static, small-vs-x) weight.
    if compute_dtype is not None and w.dtype != jnp.dtype(compute_dtype):
        w = w.astype(compute_dtype)
    w_isz = jnp.dtype(w.dtype).itemsize
    b2d = b.astype(jnp.float32).reshape(1, nf)   # bias add stays f32

    # ---- tile / residency plan, sized against this chip's VMEM ------------
    sub = max(_sublane(x2d.dtype), _sublane(w.dtype))
    if tm is None:
        tm = 512 if M >= 512 else 256            # amortize per-grid-step cost
    tm = min(_round_up(tm, sub), _round_up(M, sub))

    nx_lanes = _round_up(nx, 128)
    nf_lanes = _round_up(nf, 128)
    nx_sub_w = _round_up(nx, _sublane(w.dtype))
    x_isz = jnp.dtype(x2d.dtype).itemsize        # x is streamed in its own dtype

    def plan_bytes(tile_n):
        # Conservative: assume every operand is double-buffered by the pipeline.
        return 2 * (tm * nx_lanes * x_isz        # x tile
                    + nx_sub_w * tile_n * w_isz  # weight block
                    + tm * tile_n * out_isz      # output tile
                    + 8 * tile_n * 4)            # bias tile (f32)

    if weight_resident is None:
        weight_resident = plan_bytes(nf_lanes) <= _VMEM_BUDGET

    if weight_resident:
        # Single grid axis over M: x and w each read from HBM exactly once.
        grid = (pl.cdiv(M, tm),)
        in_specs = [
            pl.BlockSpec((tm, nx), lambda i: (i, 0)),     # x row tile (streams)
            pl.BlockSpec((nx, nf), lambda i: (0, 0)),     # full weight, resident
            pl.BlockSpec((1, nf), lambda i: (0, 0)),      # full bias, resident
        ]
        out_spec = pl.BlockSpec((tm, nf), lambda i: (i, 0))
        dim_sem = ("parallel",)                  # v7x: 2 TCs split the row range
        x_reads = 1
    else:
        # nf-tiled fallback: pick the largest lane-aligned tn that fits.
        if tn is None:
            tn = 128
            for cand in (4096, 2048, 1024, 512, 256, 128):
                c = min(cand, nf_lanes)
                if plan_bytes(c) <= _VMEM_BUDGET:
                    tn = c
                    break
        tn = min(_round_up(tn, 128), nf_lanes)
        while plan_bytes(tn) > _VMEM_BUDGET and tm > sub:
            tm = max(sub, _round_up(tm // 2, sub))
        grid_n = pl.cdiv(nf, tn)
        # Pre-casting x in the wrapper costs one extra full HBM pass over x;
        # it only pays off once the kernel re-reads x >= ~3 times.
        if (compute_dtype is not None
                and x2d.dtype != jnp.dtype(compute_dtype) and grid_n >= 3):
            x2d = x2d.astype(compute_dtype)
            x_isz = jnp.dtype(x2d.dtype).itemsize
        grid = (grid_n, pl.cdiv(M, tm))          # nf outer, M inner
        in_specs = [
            pl.BlockSpec((tm, nx), lambda j, i: (i, 0)),  # x tile (streams)
            pl.BlockSpec((nx, tn), lambda j, i: (0, j)),  # weight col tile
            pl.BlockSpec((1, tn), lambda j, i: (0, j)),   # bias col tile
        ]
        out_spec = pl.BlockSpec((tm, tn), lambda j, i: (i, j))
        dim_sem = ("parallel", "parallel")
        x_reads = grid_n

    cost = pl.CostEstimate(
        flops=2 * M * nx * nf,
        transcendentals=0,
        bytes_accessed=(x_reads * M * nx * x_isz       # x (re-)reads
                        + nx * nf * w_isz              # weight read once
                        + nf * 4                       # bias
                        + M * nf * out_isz),           # output write-once
    )

    out = pl.pallas_call(
        _conv1d_kernel,
        out_shape=jax.ShapeDtypeStruct((M, nf), out_dtype),
        grid_spec=pltpu.PrefetchScalarGridSpec(
            num_scalar_prefetch=0,
            grid=grid,
            in_specs=in_specs,
            out_specs=out_spec,
        ),
        compiler_params=pltpu.CompilerParams(
            dimension_semantics=dim_sem,
            vmem_limit_bytes=_VMEM_LIMIT,
        ),
        cost_estimate=cost,
    )(x2d, w, b2d)

    return out.reshape(*lead, nf)                # == x.view(*size_out)


if __name__ == "__main__":
    # Deterministic synthetic parameters (module inits w ~ N(0, 0.02)); no
    # checkpoint loading.
    key = jax.random.PRNGKey(0)
    kx, kw, kb, kx2 = jax.random.split(key, 4)

    B, T = 2, 8        # leading dims (batch, seq)
    nx, nf = 32, 64    # input features -> output features (rf == 1)

    x = jax.random.normal(kx, (B, T, nx), dtype=jnp.float32)
    w = 0.02 * jax.random.normal(kw, (nx, nf), dtype=jnp.float32)
    b = 0.01 * jax.random.normal(kb, (nf,), dtype=jnp.float32)

    ref = (x.reshape(-1, nx) @ w + b).reshape(B, T, nf)

    # 1) Exact f32 path (module semantics), weight-resident single-axis grid.
    out_f32 = conv1d(x, w, b, compute_dtype=jnp.float32)
    jax.block_until_ready(out_f32)
    assert out_f32.shape == (B, T, nf)
    assert jnp.allclose(out_f32, ref, atol=1e-5, rtol=1e-5)

    # 2) Default path: bf16 MXU inputs (x cast per-tile inside the kernel),
    #    f32 accumulate + f32 bias add.  Looser tolerance.
    out_def = conv1d(x, w, b)
    jax.block_until_ready(out_def)
    assert out_def.dtype == x.dtype
    assert jnp.allclose(out_def, ref, atol=5e-3, rtol=5e-2)

    # 3) Non-divisible rows + forced nf-tiled 2-D grid (exercises ragged edge
    #    blocks and the fallback path) at a still-small shape.
    x3 = jax.random.normal(kx2, (3, 43, nx), dtype=jnp.float32)   # M = 129
    ref3 = (x3.reshape(-1, nx) @ w + b).reshape(3, 43, nf)
    out3 = conv1d(x3, w, b, tm=64, compute_dtype=jnp.float32,
                  weight_resident=False)
    jax.block_until_ready(out3)
    assert out3.shape == (3, 43, nf)
    assert jnp.allclose(out3, ref3, atol=1e-5, rtol=1e-5)

    print("KERNEL_OK")
</pallas_src>

<mosaic_0001>
module attributes {stable_mosaic.version = 11 : i64} {
  func.func @_conv1d_kernel(%arg0: i32, %arg1: memref<16x32xf32, #tpu.memory_space<vmem>>, %arg2: memref<32x64xf32, #tpu.memory_space<vmem>>, %arg3: memref<1x64xf32, #tpu.memory_space<vmem>>, %arg4: memref<16x64xf32, #tpu.memory_space<vmem>>) attributes {dimension_semantics = [#tpu.dimension_semantics<parallel>], iteration_bounds = array<i64: 1>, scalar_prefetch = 0 : i64, scratch_operands = 0 : i64, tpu.core_type = #tpu.core_type<tc>, window_params = [{transform_indices = @transform_0, window_bounds = array<i64: 16, 32>}, {pipeline_mode = #tpu.pipeline_mode<synchronous>, transform_indices = @transform_1, window_bounds = array<i64: 32, 64>}, {pipeline_mode = #tpu.pipeline_mode<synchronous>, transform_indices = @transform_2, window_bounds = array<i64: 1, 64>}, {transform_indices = @transform_3, window_bounds = array<i64: 16, 64>}]} {
    %c0 = arith.constant 0 : index
    %c0_0 = arith.constant 0 : index
    %0 = vector.load %arg1[%c0, %c0_0] : memref<16x32xf32, #tpu.memory_space<vmem>>, vector<16x32xf32>
    %c0_1 = arith.constant 0 : index
    %c0_2 = arith.constant 0 : index
    %1 = vector.load %arg2[%c0_1, %c0_2] : memref<32x64xf32, #tpu.memory_space<vmem>>, vector<32x64xf32>
    %cst = arith.constant dense<0.000000e+00> : vector<16x64xf32>
    %2 = tpu.matmul %0, %1, %cst {dimension_numbers = #tpu.dot_dimension_numbers<[1], [0], [0], [1], [0, 0, 1, 1], [], []>} : vector<16x32xf32>, vector<32x64xf32>, vector<16x64xf32> -> vector<16x64xf32>
    %c0_3 = arith.constant 0 : index
    %c0_4 = arith.constant 0 : index
    %3 = vector.load %arg3[%c0_3, %c0_4] : memref<1x64xf32, #tpu.memory_space<vmem>>, vector<1x64xf32>
    %4 = vector.broadcast %3 : vector<1x64xf32> to vector<16x64xf32>
    %5 = arith.addf %2, %4 : vector<16x64xf32>
    %c0_5 = arith.constant 0 : index
    %c0_6 = arith.constant 0 : index
    %6 = vector.load %arg4[%c0_5, %c0_6] : memref<16x64xf32, #tpu.memory_space<vmem>>, vector<16x64xf32>
    tpu.vector_store %arg4[%c0_5, %c0_6], %5 {strides = array<i32>} : memref<16x64xf32, #tpu.memory_space<vmem>>, vector<16x64xf32>,
    return
  }
  func.func @transform_0(%arg0: i32) -> (i32, i32) {
    %c0_i32 = arith.constant 0 : i32
    %c0_i32_0 = arith.constant 0 : i32
    return %arg0, %c0_i32 : i32, i32
  }
  func.func @transform_1(%arg0: i32) -> (i32, i32) {
    %c0_i32 = arith.constant 0 : i32
    %c0_i32_0 = arith.constant 0 : i32
    %c0_i32_1 = arith.constant 0 : i32
    return %c0_i32, %c0_i32_0 : i32, i32
  }
  func.func @transform_2(%arg0: i32) -> (i32, i32) {
    %c0_i32 = arith.constant 0 : i32
    %c0_i32_0 = arith.constant 0 : i32
    %c0_i32_1 = arith.constant 0 : i32
    return %c0_i32, %c0_i32_0 : i32, i32
  }
  func.func @transform_3(%arg0: i32) -> (i32, i32) {
    %c0_i32 = arith.constant 0 : i32
    %c0_i32_0 = arith.constant 0 : i32
    return %arg0, %c0_i32 : i32, i32
  }
}

</mosaic_0001>

<llo_original>
// kernel: conv1d.1
$region0: #{conv1d.1}
  #allocation0 [shape = 'u32[]', space=smem, size = 0x4, offset = 0x4, fixed_abs, tag = 'smem constant byte address 0x4 - core index']
  #allocation1 [shape = 'u32[144,128]{1,0:T(1,128)}', space=vmem, size = 0x12000, scoped, tag = 'internal scratch']
  %s0 = inlined_call_operand.hbm [shape: f32[16,32], index: 0, kind: input, shape index: {}]
  %s1 = inlined_call_operand.hbm [shape: f32[32,64], index: 1, kind: input, shape index: {}]
  %s2 = inlined_call_operand.vmem [shape: f32[1,64], index: 2, kind: input, shape index: {}]
  %s3 = inlined_call_operand.hbm [shape: f32[16,64], index: 3, kind: output, shape index: {}]
  %s4 = sld [smem:[#allocation0]]
  $region30: #{conv1d.1} parent=0
    _
  %s6 = ssub.s32 1, %s4
  %s7 = scalar_select 0, %s6, %s4
  $region1: #{conv1d.1} parent=0
    #allocation2 [shape = 'u8[8192]{0}', space=vmem, size = 0x2000, scoped, tag = 'input window, operand 0, single buffered']
    #allocation3 [shape = 's32[1]{0}', space=sflag, size = 0x4, scoped, tag = 'scoped memory for conv1d.1']
    #allocation4 [shape = 's32[1]{0}', space=sflag, size = 0x4, scoped, tag = 'scoped memory for conv1d.1']
    #allocation5 [shape = 'u8[16384]{0}', space=vmem, size = 0x4000, scoped, tag = 'input window, operand 1, single buffered']
    #allocation6 [shape = 's32[1]{0}', space=sflag, size = 0x4, scoped, tag = 'scoped memory for conv1d.1']
    #allocation7 [shape = 'u8[8192]{0}', space=vmem, size = 0x2000, scoped, tag = 'output window, operand 0, single buffered']
    %8 = vsyncpa [#allocation3], 0
    %9 = vsyncpa [#allocation6], 0
    %10 = vsyncpa [#allocation4], 0
    // Predicated region
    $region2: #{conv1d.1} parent=1 // pred_check
      _
    $region3: #{conv1d.1} parent=1 // pred_check_branch
      %12 = sbr.rel (0) target = $region5
    $region4: #{conv1d.1} parent=1 // pred_region
      %s14 = ssub.s32 256, 256
      %15 = vsyncadd [#allocation3], %s14
      %s16 = sshll.u32 [#allocation2], 4
      %s17 = int_to_ptr.vmem [resolvable:$true] %s16
      %22 = dma.hbm_to_vmem [thread:$0]  %s0, 256, %s17, [#allocation3], 128, 128, 8
    $region5: #{conv1d.1} parent=1 // pred_fallthru
      _
    // Predicated region
    $region6: #{conv1d.1} parent=1 // pred_check
      _
    $region7: #{conv1d.1} parent=1 // pred_check_branch
      %24 = sbr.rel (0) target = $region9
    $region8: #{conv1d.1} parent=1 // pred_region
      %s26 = ssub.s32 512, 512
      %27 = vsyncadd [#allocation6], %s26
      %s28 = sshll.u32 [#allocation5], 4
      %s29 = int_to_ptr.vmem [resolvable:$true] %s28
      %34 = dma.hbm_to_vmem [thread:$0]  %s1, 512, %s29, [#allocation6], 128, 128, 8
    $region9: #{conv1d.1} parent=1 // pred_fallthru
      _
    // Predicated region
    $region10: #{conv1d.1} parent=1 // pred_check
      _
    $region11: #{conv1d.1} parent=1 // pred_check_branch
      %36 = sbr.rel (0) target = $region13
    $region12: #{conv1d.1} parent=1 // pred_region
      _
    $region13: #{conv1d.1} parent=1 // pred_fallthru
      _
    // Predicated region
    $region14: #{conv1d.1} parent=1 // pred_check
      _
    $region15: #{conv1d.1} parent=1 // pred_check_branch
      %38 = sbr.rel (0) target = $region17
    $region16: #{conv1d.1} parent=1 // pred_region
      %39 = dma.done [#allocation3], 256
    $region17: #{conv1d.1} parent=1 // pred_fallthru
      _
    // Predicated region
    $region18: #{conv1d.1} parent=1 // pred_check
      _
    $region19: #{conv1d.1} parent=1 // pred_check_branch
      %41 = sbr.rel (0) target = $region21
    $region20: #{conv1d.1} parent=1 // pred_region
      %42 = dma.done [#allocation6], 512
    $region21: #{conv1d.1} parent=1 // pred_fallthru
      _
    %v43 = vld [vmem:[#allocation2] sm:$0xff]
    %v44 = vld [vmem:[#allocation2 + $0x8] sm:$0xff]
    %v45 = vld [vmem:[#allocation5] sm:$0xff]
    %v46 = vld [vmem:[#allocation5 + $0x8] sm:$0xff]
    %v47 = vld [vmem:[#allocation5 + $0x10] sm:$0xff]
    %v48 = vld [vmem:[#allocation5 + $0x18] sm:$0xff]
    %v49 = vld [vmem:[%s2] sm:$0x1]
    %v51 = vlaneseq
    %v52 = vshrl.u32 %v51, 7
    %v53 = vsub.s32 0, %v52
    %v54 = vrot.slane %v49, %v53
    %vm56 = vcmask 261120
    %v58 = vsel %vm56, %v43, 0
    %v61 = vsel %vm56, %v44, 0
    %63 = vmatprep.subr.mxu0 0.0
    %64 = vmatpush1.msra.mxu0 %v45
    %65 = vmatprep.subr.mxu0 0.0
    %66 = vmatpush1.msra.mxu0 %v46
    %67 = vmatprep.subr.mxu0 0.0
    %68 = vmatpush1.msra.mxu0 %v47
    %69 = vmatprep.subr.mxu0 0.0
    %70 = vmatpush1.msra.mxu0 %v48
    %71 = vmatprep.subr.mxu0 0.0
    %72 = vmatpush1.msra.mxu0 0.0
    %73 = vmatprep.subr.mxu0 0.0
    %74 = vmatpush1.msra.mxu0 0.0
    %75 = vmatprep.subr.mxu0 0.0
    %76 = vmatpush1.msra.mxu0 0.0
    %77 = vmatprep.subr.mxu0 0.0
    %78 = vmatpush1.msra.mxu0 0.0
    %79 = vmatprep.subr.mxu0 0.0
    %80 = vmatpush1.msra.mxu0 0.0
    %81 = vmatprep.subr.mxu0 0.0
    %82 = vmatpush1.msra.mxu0 0.0
    %83 = vmatprep.subr.mxu0 0.0
    %84 = vmatpush1.msra.mxu0 0.0
    %85 = vmatprep.subr.mxu0 0.0
    %86 = vmatpush1.msra.mxu0 0.0
    %87 = vmatprep.subr.mxu0 0.0
    %88 = vmatpush1.msra.mxu0 0.0
    %89 = vmatprep.subr.mxu0 0.0
    %90 = vmatpush1.msra.mxu0 0.0
    %91 = vmatprep.subr.mxu0 0.0
    %92 = vmatpush1.msra.mxu0 0.0
    %93 = vmatprep.subr.mxu0 0.0
    %94 = vmatpush1.msra.mxu0 0.0
    %95 = vmatprep.subr.mxu0 0.0
    %96 = vmatpush1.msra.mxu0 0.0
    %97 = vmatprep.subr.mxu0 0.0
    %98 = vmatpush1.msra.mxu0 0.0
    %99 = vmatprep.subr.mxu0 0.0
    %100 = vmatpush1.msra.mxu0 0.0
    %101 = vmatprep.subr.mxu0 0.0
    %102 = vmatpush1.msra.mxu0 0.0
    %103 = vmatprep.subr.mxu0 0.0
    %104 = vmatpush1.msra.mxu0 0.0
    %105 = vmatprep.subr.mxu0 0.0
    %106 = vmatpush1.msra.mxu0 0.0
    %107 = vmatprep.subr.mxu0 0.0
    %108 = vmatpush1.msra.mxu0 0.0
    %109 = vmatprep.subr.mxu0 0.0
    %110 = vmatpush1.msra.mxu0 0.0
    %111 = vmatprep.subr.mxu0 0.0
    %112 = vmatpush1.msra.mxu0 0.0
    %113 = vmatprep.subr.mxu0 0.0
    %114 = vmatpush1.msra.mxu0 0.0
    %115 = vmatprep.subr.mxu0 0.0
    %116 = vmatpush1.msra.mxu0 0.0
    %117 = vmatprep.subr.mxu0 0.0
    %118 = vmatpush1.msra.mxu0 0.0
    %119 = vmatprep.subr.mxu0 0.0
    %120 = vmatpush1.msra.mxu0 0.0
    %121 = vmatprep.subr.mxu0 0.0
    %122 = vmatpush1.msra.mxu0 0.0
    %123 = vmatprep.subr.mxu0 0.0
    %124 = vmatpush1.msra.mxu0 0.0
    %125 = vmatprep.subr.mxu0 0.0
    %126 = vmatpush1.msra.mxu0 0.0
    %127 = vmatprep.mubr.f32.mxu0 0.0
    %128 = vmatmul.mubr.f32.gmra.mrb[0].mxu0 %v58
    %v129 = vpop.f32.mrb[0].mxu0
    %v130 = vadd.f32 %v54, %v129
    %v131 = vpop.f32.mrb[0].mxu0
    %132 = vmatprep.mubr.f32.mxu0 0.0
    %133 = vmatmul.mubr.f32.gmra.mrb[0].mxu0 %v61
    %v134 = vpop.f32.mrb[0].mxu0
    %v135 = vadd.f32 %v54, %v134
    %v136 = vpop.f32.mrb[0].mxu0
    %137 = vdwg.mxu0
    %vm138 = vcmask 523264
    %139 = vst.msk [vmem:[#allocation7] sm:$0xff] %vm138, %v130
    %140 = vst.msk [vmem:[#allocation7 + $0x8] sm:$0xff] %vm138, %v135
    // Predicated region
    $region22: #{conv1d.1} parent=1 // pred_check
      _
    $region23: #{conv1d.1} parent=1 // pred_check_branch
      %142 = sbr.rel (0) target = $region25
    $region24: #{conv1d.1} parent=1 // pred_region
      %s144 = ssub.s32 256, 256
      %145 = vsyncadd [#allocation4], %s144
      %s146 = sshll.u32 [#allocation7], 4
      %s147 = int_to_ptr.vmem [resolvable:$true] %s146
      %152 = dma.vmem_to_hbm [thread:$0]  %s147, 256, %s3, [#allocation4], 128, 128, 8
    $region25: #{conv1d.1} parent=1 // pred_fallthru
      _
    // Predicated region
    $region26: #{conv1d.1} parent=1 // pred_check
      _
    $region27: #{conv1d.1} parent=1 // pred_check_branch
      %154 = sbr.rel (0) target = $region29
    $region28: #{conv1d.1} parent=1 // pred_region
      %155 = dma.done [#allocation4], 256
    $region29: #{conv1d.1} parent=1 // pred_fallthru
      _
    %156 = vsyncpa [#allocation3], 1
    %157 = vsyncpa [#allocation6], 1
    %158 = vsyncpa [#allocation4], 1

</llo_original>
